<compile_context>
chip_gen: v7x
topology: tpu7x:2x2x1
jax: 0.10.0
libtpu: 0.0.40
codegen_flags: <defaults>
</compile_context>

<pallas_src>
import functools

import jax
import jax.numpy as jnp
from jax.experimental import pallas as pl
from jax.experimental.pallas import tpu as pltpu

_BN_EPS = 1e-5
_DROP_P = 0.5
_LANE = 128


def _round_up(x, m):
    return (x + m - 1) // m * m


def _embedding_kernel(x_ref, w_ref, b_ref, gamma_ref, beta_ref, seed_ref,
                      o_ref, acc_ref, *, tn):
    # Grid introspection at kernel top level only (never inside pl.when).
    j = pl.program_id(0)                      # H-tile index
    k = pl.program_id(1)                      # K (reduction) step
    nk = pl.num_programs(1)
    col_off = (j * tn).astype(jnp.uint32)     # global column offset of tile

    # ---------------- Linear: accumulate x @ W over the K grid axis ---------
    @pl.when(k == 0)
    def _():
        acc_ref[...] = jnp.zeros_like(acc_ref)

    acc_ref[...] += jnp.dot(x_ref[...], w_ref[...],
                            preferred_element_type=jnp.float32)

    # ---------------- Epilogue (once per H tile, at the last K step) --------
    @pl.when(k == nk - 1)
    def _():
        y = acc_ref[...] + b_ref[...]                      # (B, tn) f32

        # BatchNorm1d training mode: per-column batch mean / biased variance.
        mean = jnp.mean(y, axis=0, keepdims=True)
        diff = y - mean
        var = jnp.mean(diff * diff, axis=0, keepdims=True)
        y_hat = diff * jax.lax.rsqrt(var + _BN_EPS)

        # gamma/beta already carry the dropout 1/(1-p) scale (folded in the
        # wrapper); ReLU commutes with the positive scaling.
        z = jnp.maximum(y_hat * gamma_ref[...] + beta_ref[...], 0.0)

        # Dropout p=0.5 via a stateless counter hash (splitmix32-style).
        # Global element indices -> independent mask per grid block; purely
        # jnp integer ops, so it lowers on Mosaic TPU and in interpret mode.
        row = jax.lax.broadcasted_iota(jnp.int32, z.shape, 0).astype(jnp.uint32)
        col = jax.lax.broadcasted_iota(jnp.int32, z.shape, 1).astype(jnp.uint32)
        col = col + col_off
        h = (row * jnp.uint32(0x9E3779B9)
             + col * jnp.uint32(0x85EBCA6B)
             + seed_ref[0].astype(jnp.uint32))
        h = h ^ (h >> 16)
        h = h * jnp.uint32(0x7FEB352D)
        h = h ^ (h >> 15)
        h = h * jnp.uint32(0x846CA68B)
        h = h ^ (h >> 16)
        keep = (h & jnp.uint32(1)) == jnp.uint32(1)        # Bernoulli(0.5)

        o_ref[...] = jnp.where(keep, z, 0.0).astype(o_ref.dtype)


def embedding_layer_forward(x, w, b, gamma, beta, seed, *,
                            use_bf16_matmul=True):
    """Fused forward of EmbeddingLayer.

    x:     (B, D_in) f32
    w:     (D_in, H) f32   (== torch fc.weight.T)
    b, gamma, beta: (H,) f32
    seed:  int (dropout seed)
    Returns (B, H) f32.
    """
    B, D_in = x.shape
    H = w.shape[1]

    # ---- Tile sizes.  Batch stays untiled (BN reduces over it); H is tiled
    # lane-dense; K is tiled only when D_in is large. ----
    h_pad = _round_up(H, _LANE)
    tn = min(512, h_pad)
    h_pad = _round_up(h_pad, tn)

    if D_in <= 1024:
        tk, d_pad = D_in, D_in                      # single K step, full block
    else:
        tk = 512
        d_pad = _round_up(D_in, tk)

    # ---- Operand prep: pad + (optional) bf16 MXU operands, fold dropout
    # scale into the BN affine params. ----
    mm_dtype = jnp.bfloat16 if use_bf16_matmul else jnp.float32
    drop_scale = 1.0 / (1.0 - _DROP_P)

    xp = jnp.pad(x, ((0, 0), (0, d_pad - D_in))).astype(mm_dtype)
    wp = jnp.pad(w, ((0, d_pad - D_in), (0, h_pad - H))).astype(mm_dtype)
    bp = jnp.pad(b, (0, h_pad - H)).astype(jnp.float32).reshape(1, h_pad)
    gp = (jnp.pad(gamma, (0, h_pad - H)) * drop_scale
          ).astype(jnp.float32).reshape(1, h_pad)
    betap = (jnp.pad(beta, (0, h_pad - H)) * drop_scale
             ).astype(jnp.float32).reshape(1, h_pad)
    seed_arr = jnp.asarray([seed], dtype=jnp.int32)

    grid = (h_pad // tn, d_pad // tk)               # (H tiles, K tiles)

    # ---- VMEM budget / cost hints. ----
    isz = jnp.dtype(mm_dtype).itemsize
    est_vmem = (2 * (B * tk * isz + tk * tn * isz + 3 * tn * 4)   # dbl-buf in
                + 2 * B * tn * 4                                  # dbl-buf out
                + B * tn * 4)                                     # accumulator
    vmem_limit = int(min(max(4 * est_vmem, 32 * 1024 * 1024),
                         48 * 1024 * 1024))
    cost = pl.CostEstimate(
        flops=2 * B * d_pad * h_pad,
        transcendentals=0,
        bytes_accessed=(xp.size + wp.size) * isz + (3 * h_pad + B * h_pad) * 4)

    out = pl.pallas_call(
        functools.partial(_embedding_kernel, tn=tn),
        out_shape=jax.ShapeDtypeStruct((B, h_pad), jnp.float32),
        grid=grid,
        in_specs=[
            pl.BlockSpec((B, tk), lambda j, k: (0, k)),      # x
            pl.BlockSpec((tk, tn), lambda j, k: (k, j)),     # w
            pl.BlockSpec((1, tn), lambda j, k: (0, j)),      # bias
            pl.BlockSpec((1, tn), lambda j, k: (0, j)),      # gamma (scaled)
            pl.BlockSpec((1, tn), lambda j, k: (0, j)),      # beta  (scaled)
            pl.BlockSpec(memory_space=pltpu.MemorySpace.SMEM),  # seed
        ],
        out_specs=pl.BlockSpec((B, tn), lambda j, k: (0, j)),
        scratch_shapes=[pltpu.VMEM((B, tn), jnp.float32)],
        compiler_params=pltpu.CompilerParams(
            dimension_semantics=("parallel", "arbitrary"),
            vmem_limit_bytes=vmem_limit),
        cost_estimate=cost,
    )(xp, wp, bp, gp, betap, seed_arr)

    return out[:, :H]


if __name__ == "__main__":
    # Small shapes consistent with the module: batch=8, input_dim=16, hidden=32.
    B, D_IN, HID = 8, 16, 32

    key = jax.random.PRNGKey(0)
    kx, kw, kb = jax.random.split(key, 3)

    x = jax.random.normal(kx, (B, D_IN), dtype=jnp.float32)
    bound = 1.0 / (D_IN ** 0.5)
    w = jax.random.uniform(kw, (D_IN, HID), jnp.float32, -bound, bound)
    b = jax.random.uniform(kb, (HID,), jnp.float32, -bound, bound)
    gamma = jnp.ones((HID,), jnp.float32)   # BatchNorm1d default affine init
    beta = jnp.zeros((HID,), jnp.float32)

    # Default (bf16-MXU) path.
    out = embedding_layer_forward(x, w, b, gamma, beta, seed=0)
    out = jax.block_until_ready(out)
    assert out.shape == (B, HID)
    assert out.dtype == jnp.float32
    assert bool(jnp.all(jnp.isfinite(out)))

    # Light correctness check on the f32 path: every output element must be
    # either dropped (0) or equal to 2 * ReLU(BN(Linear(x))).
    out_f32 = embedding_layer_forward(x, w, b, gamma, beta, seed=0,
                                      use_bf16_matmul=False)
    out_f32 = jax.block_until_ready(out_f32)
    y = x @ w + b
    mean = y.mean(axis=0, keepdims=True)
    var = ((y - mean) ** 2).mean(axis=0, keepdims=True)
    ref = jnp.maximum((y - mean) / jnp.sqrt(var + _BN_EPS) * gamma + beta,
                      0.0) * (1.0 / (1.0 - _DROP_P))
    err = jnp.minimum(jnp.abs(out_f32), jnp.abs(out_f32 - ref))
    assert float(err.max()) < 1e-3, float(err.max())

    print("KERNEL_OK")
</pallas_src>

<mosaic_0001>
module attributes {stable_mosaic.version = 11 : i64} {
  func.func @_embedding_kernel(%arg0: i32, %arg1: i32, %arg2: memref<8x16xbf16, #tpu.memory_space<vmem>>, %arg3: memref<16x128xbf16, #tpu.memory_space<vmem>>, %arg4: memref<1x128xf32, #tpu.memory_space<vmem>>, %arg5: memref<1x128xf32, #tpu.memory_space<vmem>>, %arg6: memref<1x128xf32, #tpu.memory_space<vmem>>, %arg7: memref<1xi32, #tpu.memory_space<smem>>, %arg8: memref<8x128xf32, #tpu.memory_space<vmem>>, %arg9: memref<8x128xf32, #tpu.memory_space<vmem>>) attributes {dimension_semantics = [#tpu.dimension_semantics<parallel>, #tpu.dimension_semantics<arbitrary>], iteration_bounds = array<i64: 1, 1>, scalar_prefetch = 0 : i64, scratch_operands = 1 : i64, tpu.core_type = #tpu.core_type<tc>, window_params = [{transform_indices = @transform_0, window_bounds = array<i64: 8, 16>}, {transform_indices = @transform_1, window_bounds = array<i64: 16, 128>}, {transform_indices = @transform_2, window_bounds = array<i64: 1, 128>}, {transform_indices = @transform_3, window_bounds = array<i64: 1, 128>}, {transform_indices = @transform_4, window_bounds = array<i64: 1, 128>}, {transform_indices = @transform_5, window_bounds = array<i64: 1>}, {transform_indices = @transform_6, window_bounds = array<i64: 8, 128>}]} {
    %c128_i32 = arith.constant 128 : i32
    %0 = arith.muli %arg0, %c128_i32 : i32
    %c0_i32 = arith.constant 0 : i32
    %1 = arith.cmpi eq, %arg1, %c0_i32 : i32
    %2 = arith.extui %1 : i1 to i32
    %c0_i32_0 = arith.constant 0 : i32
    %3 = arith.cmpi ne, %2, %c0_i32_0 : i32
    scf.if %3 {
      %cst_10 = arith.constant 0.000000e+00 : f32
      %13 = vector.broadcast %cst_10 : f32 to vector<8x128xf32>
      %c0_11 = arith.constant 0 : index
      %c0_12 = arith.constant 0 : index
      %14 = vector.load %arg9[%c0_11, %c0_12] : memref<8x128xf32, #tpu.memory_space<vmem>>, vector<8x128xf32>
      tpu.vector_store %arg9[%c0_11, %c0_12], %13 {strides = array<i32>} : memref<8x128xf32, #tpu.memory_space<vmem>>, vector<8x128xf32>,
    } else {
    }
    %c0 = arith.constant 0 : index
    %c0_1 = arith.constant 0 : index
    %4 = vector.load %arg9[%c0, %c0_1] : memref<8x128xf32, #tpu.memory_space<vmem>>, vector<8x128xf32>
    %c0_2 = arith.constant 0 : index
    %c0_3 = arith.constant 0 : index
    %5 = vector.load %arg2[%c0_2, %c0_3] : memref<8x16xbf16, #tpu.memory_space<vmem>>, vector<8x16xbf16>
    %c0_4 = arith.constant 0 : index
    %c0_5 = arith.constant 0 : index
    %6 = vector.load %arg3[%c0_4, %c0_5] : memref<16x128xbf16, #tpu.memory_space<vmem>>, vector<16x128xbf16>
    %cst = arith.constant dense<0.000000e+00> : vector<8x128xf32>
    %7 = tpu.matmul %5, %6, %cst {dimension_numbers = #tpu.dot_dimension_numbers<[1], [0], [0], [1], [0, 0, 1, 1], [], []>} : vector<8x16xbf16>, vector<16x128xbf16>, vector<8x128xf32> -> vector<8x128xf32>
    %8 = arith.addf %4, %7 : vector<8x128xf32>
    %c0_6 = arith.constant 0 : index
    %c0_7 = arith.constant 0 : index
    %9 = vector.load %arg9[%c0_6, %c0_7] : memref<8x128xf32, #tpu.memory_space<vmem>>, vector<8x128xf32>
    tpu.vector_store %arg9[%c0_6, %c0_7], %8 {strides = array<i32>} : memref<8x128xf32, #tpu.memory_space<vmem>>, vector<8x128xf32>,
    %c0_i32_8 = arith.constant 0 : i32
    %10 = arith.cmpi eq, %arg1, %c0_i32_8 : i32
    %11 = arith.extui %10 : i1 to i32
    %c0_i32_9 = arith.constant 0 : i32
    %12 = arith.cmpi ne, %11, %c0_i32_9 : i32
    scf.if %12 {
      %c0_10 = arith.constant 0 : index
      %c0_11 = arith.constant 0 : index
      %13 = vector.load %arg9[%c0_10, %c0_11] : memref<8x128xf32, #tpu.memory_space<vmem>>, vector<8x128xf32>
      %c0_12 = arith.constant 0 : index
      %c0_13 = arith.constant 0 : index
      %14 = vector.load %arg4[%c0_12, %c0_13] : memref<1x128xf32, #tpu.memory_space<vmem>>, vector<1x128xf32>
      %15 = vector.broadcast %14 : vector<1x128xf32> to vector<8x128xf32>
      %16 = arith.addf %13, %15 : vector<8x128xf32>
      %cst_14 = arith.constant dense<0.000000e+00> : vector<128xf32>
      %17 = vector.multi_reduction <add>, %16, %cst_14 [0] : vector<8x128xf32> to vector<128xf32>
      %18 = vector.shape_cast %17 : vector<128xf32> to vector<1x128xf32>
      %cst_15 = arith.constant 8.000000e+00 : f32
      %19 = vector.broadcast %cst_15 : f32 to vector<1x128xf32>
      %20 = arith.divf %18, %19 : vector<1x128xf32>
      %21 = vector.broadcast %20 : vector<1x128xf32> to vector<8x128xf32>
      %22 = arith.subf %16, %21 : vector<8x128xf32>
      %23 = arith.mulf %22, %22 : vector<8x128xf32>
      %cst_16 = arith.constant dense<0.000000e+00> : vector<128xf32>
      %24 = vector.multi_reduction <add>, %23, %cst_16 [0] : vector<8x128xf32> to vector<128xf32>
      %25 = vector.shape_cast %24 : vector<128xf32> to vector<1x128xf32>
      %cst_17 = arith.constant 8.000000e+00 : f32
      %26 = vector.broadcast %cst_17 : f32 to vector<1x128xf32>
      %27 = arith.divf %25, %26 : vector<1x128xf32>
      %cst_18 = arith.constant 9.99999974E-6 : f32
      %28 = vector.broadcast %cst_18 : f32 to vector<1x128xf32>
      %29 = arith.addf %27, %28 : vector<1x128xf32>
      %30 = math.rsqrt %29 : vector<1x128xf32>
      %31 = vector.broadcast %30 : vector<1x128xf32> to vector<8x128xf32>
      %32 = arith.mulf %22, %31 : vector<8x128xf32>
      %c0_19 = arith.constant 0 : index
      %c0_20 = arith.constant 0 : index
      %33 = vector.load %arg5[%c0_19, %c0_20] : memref<1x128xf32, #tpu.memory_space<vmem>>, vector<1x128xf32>
      %34 = vector.broadcast %33 : vector<1x128xf32> to vector<8x128xf32>
      %35 = arith.mulf %32, %34 : vector<8x128xf32>
      %c0_21 = arith.constant 0 : index
      %c0_22 = arith.constant 0 : index
      %36 = vector.load %arg6[%c0_21, %c0_22] : memref<1x128xf32, #tpu.memory_space<vmem>>, vector<1x128xf32>
      %37 = vector.broadcast %36 : vector<1x128xf32> to vector<8x128xf32>
      %38 = arith.addf %35, %37 : vector<8x128xf32>
      %cst_23 = arith.constant 0.000000e+00 : f32
      %39 = vector.broadcast %cst_23 : f32 to vector<8x128xf32>
      %40 = arith.maximumf %38, %39 : vector<8x128xf32>
      %41 = tpu.iota {dimensions = array<i32: 0>} : vector<8x128xi32>
      %42 = tpu.iota {dimensions = array<i32: 1>} : vector<8x128xi32>
      %43 = vector.broadcast %0 : i32 to vector<8x128xi32>
      %44 = arith.addi %42, %43 : vector<8x128xi32>
      %c-1640531527_i32 = arith.constant -1640531527 : i32
      %45 = vector.broadcast %c-1640531527_i32 : i32 to vector<8x128xi32>
      %46 = arith.muli %41, %45 : vector<8x128xi32>
      %c-2048144789_i32 = arith.constant -2048144789 : i32
      %47 = vector.broadcast %c-2048144789_i32 : i32 to vector<8x128xi32>
      %48 = arith.muli %44, %47 : vector<8x128xi32>
      %49 = arith.addi %46, %48 : vector<8x128xi32>
      %c0_24 = arith.constant 0 : index
      %50 = memref.load %arg7[%c0_24] : memref<1xi32, #tpu.memory_space<smem>>
      %51 = vector.broadcast %50 : i32 to vector<8x128xi32>
      %52 = arith.addi %49, %51 : vector<8x128xi32>
      %c16_i32 = arith.constant 16 : i32
      %53 = vector.broadcast %c16_i32 : i32 to vector<8x128xi32>
      %54 = arith.shrui %52, %53 : vector<8x128xi32>
      %55 = arith.xori %52, %54 : vector<8x128xi32>
      %c2146121005_i32 = arith.constant 2146121005 : i32
      %56 = vector.broadcast %c2146121005_i32 : i32 to vector<8x128xi32>
      %57 = arith.muli %55, %56 : vector<8x128xi32>
      %c15_i32 = arith.constant 15 : i32
      %58 = vector.broadcast %c15_i32 : i32 to vector<8x128xi32>
      %59 = arith.shrui %57, %58 : vector<8x128xi32>
      %60 = arith.xori %57, %59 : vector<8x128xi32>
      %c-2073254261_i32 = arith.constant -2073254261 : i32
      %61 = vector.broadcast %c-2073254261_i32 : i32 to vector<8x128xi32>
      %62 = arith.muli %60, %61 : vector<8x128xi32>
      %c16_i32_25 = arith.constant 16 : i32
      %63 = vector.broadcast %c16_i32_25 : i32 to vector<8x128xi32>
      %64 = arith.shrui %62, %63 : vector<8x128xi32>
      %65 = arith.xori %62, %64 : vector<8x128xi32>
      %c1_i32 = arith.constant 1 : i32
      %66 = vector.broadcast %c1_i32 : i32 to vector<8x128xi32>
      %67 = arith.andi %65, %66 : vector<8x128xi32>
      %c1_i32_26 = arith.constant 1 : i32
      %68 = vector.broadcast %c1_i32_26 : i32 to vector<8x128xi32>
      %69 = arith.cmpi eq, %67, %68 : vector<8x128xi32>
      %cst_27 = arith.constant 0.000000e+00 : f32
      %70 = vector.broadcast %cst_27 : f32 to vector<8x128xf32>
      %71 = arith.select %69, %40, %70 : vector<8x128xi1>, vector<8x128xf32>
      %c0_28 = arith.constant 0 : index
      %c0_29 = arith.constant 0 : index
      %72 = vector.load %arg8[%c0_28, %c0_29] : memref<8x128xf32, #tpu.memory_space<vmem>>, vector<8x128xf32>
      tpu.vector_store %arg8[%c0_28, %c0_29], %71 {strides = array<i32>} : memref<8x128xf32, #tpu.memory_space<vmem>>, vector<8x128xf32>,
    } else {
    }
    return
  }
  func.func @transform_0(%arg0: i32, %arg1: i32) -> (i32, i32) {
    %c0_i32 = arith.constant 0 : i32
    %c0_i32_0 = arith.constant 0 : i32
    return %c0_i32, %arg1 : i32, i32
  }
  func.func @transform_1(%arg0: i32, %arg1: i32) -> (i32, i32) {
    %c0_i32 = arith.constant 0 : i32
    return %arg1, %arg0 : i32, i32
  }
  func.func @transform_2(%arg0: i32, %arg1: i32) -> (i32, i32) {
    %c0_i32 = arith.constant 0 : i32
    %c0_i32_0 = arith.constant 0 : i32
    return %c0_i32, %arg0 : i32, i32
  }
  func.func @transform_3(%arg0: i32, %arg1: i32) -> (i32, i32) {
    %c0_i32 = arith.constant 0 : i32
    %c0_i32_0 = arith.constant 0 : i32
    return %c0_i32, %arg0 : i32, i32
  }
  func.func @transform_4(%arg0: i32, %arg1: i32) -> (i32, i32) {
    %c0_i32 = arith.constant 0 : i32
    %c0_i32_0 = arith.constant 0 : i32
    return %c0_i32, %arg0 : i32, i32
  }
  func.func @transform_5(%arg0: i32, %arg1: i32) -> i32 {
    %c0_i32 = arith.constant 0 : i32
    %c0_i32_0 = arith.constant 0 : i32
    return %c0_i32 : i32
  }
  func.func @transform_6(%arg0: i32, %arg1: i32) -> (i32, i32) {
    %c0_i32 = arith.constant 0 : i32
    %c0_i32_0 = arith.constant 0 : i32
    return %c0_i32, %arg0 : i32, i32
  }
}

</mosaic_0001>

<llo_original>
// kernel: tpu_custom_call.1
$region0: #{tpu_custom_call.1}
  #allocation0 [shape = 'u32[]', space=smem, size = 0x4, offset = 0x4, fixed_abs, tag = 'smem constant byte address 0x4 - core index']
  #allocation1 [shape = 'u32[144,128]{1,0:T(1,128)}', space=vmem, size = 0x12000, scoped, tag = 'internal scratch']
  #allocation2 [shape = 'f32[8,128]{1,0:T(8,128)}', space=vmem, size = 0x1000, scoped, tag = 'scratch operand']
  #allocation3 [shape = 's32[1]{0:T(128)S(6)}', space=smem, size = 0x200, scoped, tag = 'scoped memory for tpu_custom_call.1']
  %s0 = inlined_call_operand.hbm [shape: bf16[8,16], index: 0, kind: input, shape index: {}]
  %s1 = inlined_call_operand.hbm [shape: bf16[16,128], index: 1, kind: input, shape index: {}]
  %s2 = inlined_call_operand.vmem [shape: f32[1,128], index: 2, kind: input, shape index: {}]
  %s3 = inlined_call_operand.vmem [shape: f32[1,128], index: 3, kind: input, shape index: {}]
  %s4 = inlined_call_operand.vmem [shape: f32[1,128], index: 4, kind: input, shape index: {}]
  %s5 = inlined_call_operand.<no memory space> [shape: s32[1], index: 5, kind: input, shape index: {}]
  %s6 = inlined_call_operand.hbm [shape: f32[8,128], index: 6, kind: output, shape index: {}]
  %s7 = sld [smem:[#allocation0]]
  $region50: #{tpu_custom_call.1} parent=0
    _
  %s9 = ssub.s32 1, %s7
  %s10 = scalar_select 0, %s9, %s7
  %11 = sst [smem:[#allocation3]] %s5
  $region1: #{tpu_custom_call.1} parent=0
    #allocation4 [shape = 'u8[2048]{0}', space=vmem, size = 0x800, scoped, tag = 'input window, operand 0, single buffered']
    #allocation5 [shape = 's32[1]{0}', space=sflag, size = 0x4, scoped, tag = 'scoped memory for tpu_custom_call.1']
    #allocation6 [shape = 's32[1]{0}', space=sflag, size = 0x4, scoped, tag = 'scoped memory for tpu_custom_call.1']
    #allocation7 [shape = 'u8[4096]{0}', space=vmem, size = 0x1000, scoped, tag = 'input window, operand 1, single buffered']
    #allocation8 [shape = 's32[1]{0}', space=sflag, size = 0x4, scoped, tag = 'scoped memory for tpu_custom_call.1']
    #allocation9 [shape = 'u8[4096]{0}', space=vmem, size = 0x1000, scoped, tag = 'output window, operand 0, single buffered']
    %12 = vsyncpa [#allocation5], 0
    %13 = vsyncpa [#allocation8], 0
    %14 = vsyncpa [#allocation6], 0
    // Predicated region
    $region2: #{tpu_custom_call.1} parent=1 // pred_check
      _
    $region3: #{tpu_custom_call.1} parent=1 // pred_check_branch
      %16 = sbr.rel (0) target = $region5
    $region4: #{tpu_custom_call.1} parent=1 // pred_region
      %s18 = ssub.s32 64, 64
      %19 = vsyncadd [#allocation5], %s18
      %s21 = sshll.u32 [#allocation4], 4
      %s22 = int_to_ptr.vmem [resolvable:$true] %s21
      %24 = dma.hbm_to_vmem [thread:$0]  %s0, 64, %s22, [#allocation5]
    $region5: #{tpu_custom_call.1} parent=1 // pred_fallthru
      _
    // Predicated region
    $region6: #{tpu_custom_call.1} parent=1 // pred_check
      _
    $region7: #{tpu_custom_call.1} parent=1 // pred_check_branch
      %26 = sbr.rel (0) target = $region9
    $region8: #{tpu_custom_call.1} parent=1 // pred_region
      %s28 = ssub.s32 128, 128
      %29 = vsyncadd [#allocation8], %s28
      %s30 = sshll.u32 [#allocation7], 4
      %s31 = int_to_ptr.vmem [resolvable:$true] %s30
      %36 = dma.hbm_to_vmem [thread:$0]  %s1, 128, %s31, [#allocation8], 64, 64, 4
    $region9: #{tpu_custom_call.1} parent=1 // pred_fallthru
      _
    // Predicated region
    $region10: #{tpu_custom_call.1} parent=1 // pred_check
      _
    $region11: #{tpu_custom_call.1} parent=1 // pred_check_branch
      %38 = sbr.rel (0) target = $region13
    $region12: #{tpu_custom_call.1} parent=1 // pred_region
      _
    $region13: #{tpu_custom_call.1} parent=1 // pred_fallthru
      _
    // Predicated region
    $region14: #{tpu_custom_call.1} parent=1 // pred_check
      _
    $region15: #{tpu_custom_call.1} parent=1 // pred_check_branch
      %40 = sbr.rel (0) target = $region17
    $region16: #{tpu_custom_call.1} parent=1 // pred_region
      _
    $region17: #{tpu_custom_call.1} parent=1 // pred_fallthru
      _
    // Predicated region
    $region18: #{tpu_custom_call.1} parent=1 // pred_check
      _
    $region19: #{tpu_custom_call.1} parent=1 // pred_check_branch
      %42 = sbr.rel (0) target = $region21
    $region20: #{tpu_custom_call.1} parent=1 // pred_region
      _
    $region21: #{tpu_custom_call.1} parent=1 // pred_fallthru
      _
    // Predicated region
    $region22: #{tpu_custom_call.1} parent=1 // pred_check
      _
    $region23: #{tpu_custom_call.1} parent=1 // pred_check_branch
      %44 = sbr.rel (0) target = $region25
    $region24: #{tpu_custom_call.1} parent=1 // pred_region
      _
    $region25: #{tpu_custom_call.1} parent=1 // pred_fallthru
      _
    // Predicated region
    $region26: #{tpu_custom_call.1} parent=1 // pred_check
      _
    $region27: #{tpu_custom_call.1} parent=1 // pred_check_branch
      %46 = sbr.rel (0) target = $region29
    $region28: #{tpu_custom_call.1} parent=1 // pred_region
      %47 = dma.done [#allocation5], 64
    $region29: #{tpu_custom_call.1} parent=1 // pred_fallthru
      _
    // Predicated region
    $region30: #{tpu_custom_call.1} parent=1 // pred_check
      _
    $region31: #{tpu_custom_call.1} parent=1 // pred_check_branch
      %49 = sbr.rel (0) target = $region33
    $region32: #{tpu_custom_call.1} parent=1 // pred_region
      %50 = dma.done [#allocation8], 128
    $region33: #{tpu_custom_call.1} parent=1 // pred_fallthru
      _
    %s52 = smul.u32 0, 128
    %p53 = scmp.eq.s32.totalorder 0, 0
    // Predicated region
    $region34: #{tpu_custom_call.1} parent=1 // pred_check
      %p54 = pneg %p53
    $region35: #{tpu_custom_call.1} parent=1 // pred_check_branch
      %56 = sbr.rel (%p54) target = $region37
    $region36: #{tpu_custom_call.1} parent=1 // pred_region
      %57 = vst [vmem:[#allocation2] sm:$0xff] 0.0
    $region37: #{tpu_custom_call.1} parent=1 // pred_fallthru
      _
    %v58 = vld [vmem:[#allocation2] sm:$0xff]
    %v59 = vld [vmem:[#allocation4] sm:$0xf]
    %v60 = vld [vmem:[#allocation7] sm:$0xf]
    %v61 = vld [vmem:[#allocation7 + $0x4] sm:$0xf]
    %v64 = vunpack.c.l.b16 %v60
    %v65 = vunpack.c.l.b16 %v61
    %v66 = vpack.c.b16 %v65, %v64
    %vm68 = vcmask 130048
    %v70 = vsel %vm68, %v59, 0
    %72 = vmatprep.subr.bf16.mxu0 0
    %73 = vmatpush1.bf16.msra.mxu0 %v66
    %74 = vmatprep.subr.bf16.mxu0 0
    %75 = vmatpush1.bf16.msra.mxu0 0
    %76 = vmatprep.subr.bf16.mxu0 0
    %77 = vmatpush1.bf16.msra.mxu0 0
    %78 = vmatprep.subr.bf16.mxu0 0
    %79 = vmatpush1.bf16.msra.mxu0 0
    %80 = vmatprep.subr.bf16.mxu0 0
    %81 = vmatpush1.bf16.msra.mxu0 0
    %82 = vmatprep.subr.bf16.mxu0 0
    %83 = vmatpush1.bf16.msra.mxu0 0
    %84 = vmatprep.subr.bf16.mxu0 0
    %85 = vmatpush1.bf16.msra.mxu0 0
    %86 = vmatprep.subr.bf16.mxu0 0
    %87 = vmatpush1.bf16.msra.mxu0 0
    %88 = vmatprep.subr.bf16.mxu0 0
    %89 = vmatpush1.bf16.msra.mxu0 0
    %90 = vmatprep.subr.bf16.mxu0 0
    %91 = vmatpush1.bf16.msra.mxu0 0
    %92 = vmatprep.subr.bf16.mxu0 0
    %93 = vmatpush1.bf16.msra.mxu0 0
    %94 = vmatprep.subr.bf16.mxu0 0
    %95 = vmatpush1.bf16.msra.mxu0 0
    %96 = vmatprep.subr.bf16.mxu0 0
    %97 = vmatpush1.bf16.msra.mxu0 0
    %98 = vmatprep.subr.bf16.mxu0 0
    %99 = vmatpush1.bf16.msra.mxu0 0
    %100 = vmatprep.subr.bf16.mxu0 0
    %101 = vmatpush1.bf16.msra.mxu0 0
    %102 = vmatprep.subr.bf16.mxu0 0
    %103 = vmatpush1.bf16.msra.mxu0 0
    %104 = vmatprep.mubr.bf16.mxu0 0
    %105 = vmatmul.mubr.bf16.gmra.mrb[0].mxu0 %v70
    %v106 = vpop.f32.mrb[0].mxu0
    %v107 = vadd.f32 0.0, %v106
    %v108 = vpop.f32.mrb[0].mxu0
    %v109 = vpop.f32.mrb[0].mxu0
    %v110 = vpop.f32.mrb[0].mxu0
    %111 = vdwg.mxu0
    %v112 = vadd.f32 %v58, %v107
    %113 = vst [vmem:[#allocation2] sm:$0xff] %v112
    // Predicated region
    $region38: #{tpu_custom_call.1} parent=1 // pred_check
      %p114 = pneg %p53
    $region39: #{tpu_custom_call.1} parent=1 // pred_check_branch
      %116 = sbr.rel (%p114) target = $region41
    $region40: #{tpu_custom_call.1} parent=1 // pred_region
      %v117 = vld [vmem:[#allocation2] sm:$0xff]
      %v118 = vld [vmem:[%s2] sm:$0x1]
      %v120 = vlaneseq
      %v121 = vshrl.u32 %v120, 7
      %v122 = vsub.s32 0, %v121
      %v123 = vrot.slane %v118, %v122
      %v125 = vadd.f32 %v117, %v123
      %v126 = vrot.slane %v125, 4
      %v127 = vadd.f32 %v125, %v126
      %v128 = vrot.slane %v127, 2
      %v129 = vadd.f32 %v127, %v128
      %v130 = vrot.slane %v129, 1
      %v131 = vadd.f32 %v129, %v130
      %v132 = vrcp.pop 8.0
      %v133 = vmul.f32 %v131, %v132
      %v134 = vsub.f32 %v125, %v133
      %v135 = vmul.f32 %v134, %v134
      %v136 = vrot.slane %v135, 4
      %v137 = vadd.f32 %v135, %v136
      %v138 = vrot.slane %v137, 2
      %v139 = vadd.f32 %v137, %v138
      %v140 = vrot.slane %v139, 1
      %v141 = vadd.f32 %v139, %v140
      %v142 = vmul.f32 %v141, %v132
      %v143 = vadd.f32 %v142, 1e-05
      %v144 = vrsqrt.pop %v143
      %v145 = vmul.f32 %v134, %v144
      %v146 = vld [vmem:[%s3] sm:$0x1]
      %v148 = vlaneseq
      %v149 = vshrl.u32 %v148, 7
      %v150 = vsub.s32 0, %v149
      %v151 = vrot.slane %v146, %v150
      %v153 = vmul.f32 %v145, %v151
      %v154 = vld [vmem:[%s4] sm:$0x1]
      %v156 = vlaneseq
      %v157 = vshrl.u32 %v156, 7
      %v158 = vsub.s32 0, %v157
      %v159 = vrot.slane %v154, %v158
      %v161 = vadd.f32 %v153, %v159
      %v162 = vmax.f32 %v161, 0.0
      %v163 = vlaneseq
      %v164 = vshrl.u32 %v163, 7
      %v165 = vlaneseq
      %v166 = vand.u32 %v165, 127
      %v167 = vstv %s52
      %v168 = vadd.s32 %v166, %v167
      %v169 = vmul.u32 %v164, 2654435769
      %v170 = vmul.u32 %v168, 2246822507
      %v171 = vadd.s32 %v169, %v170
      %s172 = sld [smem:[#allocation3]]
      %v173 = vstv %s172
      %v174 = vadd.s32 %v171, %v173
      %v175 = vshrl.u32 %v174, 16
      %v176 = vxor.u32 %v174, %v175
      %v177 = vmul.u32 %v176, 2146121005
      %v178 = vshrl.u32 %v177, 15
      %v179 = vxor.u32 %v177, %v178
      %v180 = vmul.u32 %v179, 2221713035
      %v181 = vshrl.u32 %v180, 16
      %v182 = vxor.u32 %v180, %v181
      %v183 = vand.u32 %v182, 1
      %vm184 = vcmp.eq.s32.totalorder %v183, 1
      %v185 = vsel %vm184, %v162, 0.0
      %186 = vst [vmem:[#allocation9] sm:$0xff] %v185
    $region41: #{tpu_custom_call.1} parent=1 // pred_fallthru
      _
    // Predicated region
    $region42: #{tpu_custom_call.1} parent=1 // pred_check
      _
    $region43: #{tpu_custom_call.1} parent=1 // pred_check_branch
      %188 = sbr.rel (0) target = $region45
    $region44: #{tpu_custom_call.1} parent=1 // pred_region
      %s190 = ssub.s32 128, 128
      %191 = vsyncadd [#allocation6], %s190
      %s193 = sshll.u32 [#allocation9], 4
      %s194 = int_to_ptr.vmem [resolvable:$true] %s193
      %196 = dma.vmem_to_hbm [thread:$0]  %s194, 128, %s6, [#allocation6]
    $region45: #{tpu_custom_call.1} parent=1 // pred_fallthru
      _
    // Predicated region
    $region46: #{tpu_custom_call.1} parent=1 // pred_check
      _
    $region47: #{tpu_custom_call.1} parent=1 // pred_check_branch
      %198 = sbr.rel (0) target = $region49
    $region48: #{tpu_custom_call.1} parent=1 // pred_region
      %199 = dma.done [#allocation6], 128
    $region49: #{tpu_custom_call.1} parent=1 // pred_fallthru
      _
    %200 = vsyncpa [#allocation5], 1
    %201 = vsyncpa [#allocation8], 1
    %202 = vsyncpa [#allocation6], 1

</llo_original>
